<compile_context>
chip_gen: v6e
topology: v6e:2x2x1
jax: 0.10.0
libtpu: 0.0.40
codegen_flags: <defaults>
</compile_context>

<pallas_src>
import functools

import jax
import jax.numpy as jnp
from jax.experimental import pallas as pl
from jax.experimental.pallas import tpu as pltpu


def _pos_emb_add_kernel(x_ref, pos_ref, o_ref):
    # x_ref: (TB, TN), pos_ref: (1, TN), o_ref: (TB, TN) — VPU broadcast-add.
    # Cast pos in-kernel (free under DMA) instead of a wrapper-side HBM pass.
    o_ref[...] = x_ref[...] + pos_ref[...].astype(x_ref.dtype)


def _pick_tiles(B, N, itemsize, target_block_bytes):
    """Choose (TB, TN) for the flattened (B, N) view.

    TB is dtype-aware (full-vreg sublane packing: 8 rows f32, 16 bf16,
    32 int8/fp8) or == B. TN is a multiple of 128 (or == N), sized so the
    block footprint TB*TN*itemsize stays roughly <= target_block_bytes.
    """
    target_elems = max(1, target_block_bytes // itemsize)

    # Sublane (batch) tile: full-vreg packing for the dtype.
    sub = max(8, 32 // max(1, itemsize))  # 8 f32, 16 bf16, 32 int8/fp8
    TB = B if B <= sub else sub

    # Column (lane) tile over the flattened seq_len*dim axis.
    col_budget = max(128, target_elems // TB)
    if N <= col_budget:
        TN = N
        if B > TB:
            # Spend leftover budget on more batch rows (keep sublane-aligned).
            extra = (target_elems // max(N, 1)) // sub * sub
            TB = min(B, max(sub, extra))
    else:
        cap = (col_budget // 128) * 128
        TN = cap
        # Prefer a lane-aligned tile that divides N exactly (no masked tail),
        # but reject tiny divisors: a degenerate TN (e.g. 128) costs far more
        # in per-grid-step overhead than one masked tail block.
        min_ok = max(cap // 2, 128)
        for cand in range(cap, 127, -128):
            if cand < min_ok:
                break
            if N % cand == 0:
                TN = cand
                break
    return TB, TN


@functools.partial(jax.jit, static_argnames=("target_block_bytes", "in_place"))
def learned_positional_embedding_1d(
    x, pos_embedding, *, target_block_bytes=4 * 1024 * 1024, in_place=False
):
    """x: (B, S, D), pos_embedding: (1, S, D) -> x + pos_embedding, shape (B, S, D)."""
    B, S, D = x.shape
    assert pos_embedding.shape == (1, S, D), pos_embedding.shape

    N = S * D
    itemsize = x.dtype.itemsize

    # Lane-dense 2-D views (contiguous reshape => free layout plumbing).
    x2 = x.reshape(B, N)
    pos2 = pos_embedding.reshape(1, N)

    TB, TN = _pick_tiles(B, N, itemsize, target_block_bytes)

    # Column axis outermost (parallel, extent >= other axis for ViT shapes),
    # batch blocks innermost so the pos tile is not re-fetched per batch block.
    grid = (pl.cdiv(N, TN), pl.cdiv(B, TB))

    # Scoped-VMEM budget: double-buffered x + out blocks, double-buffered pos
    # tile, plus headroom. Safe on v5e (16 MiB default) and v7x (64 MiB phys).
    block_bytes = TB * TN * itemsize
    pos_bytes = TN * max(itemsize, pos_embedding.dtype.itemsize)
    needed = 4 * block_bytes + 2 * pos_bytes
    vmem_limit = int(min(max(needed + (4 << 20), 16 << 20), 48 << 20))

    out2 = pl.pallas_call(
        _pos_emb_add_kernel,
        out_shape=jax.ShapeDtypeStruct((B, N), x.dtype),
        grid=grid,
        in_specs=[
            pl.BlockSpec((TB, TN), lambda c, b: (b, c)),
            # pos: block index constant along the inner (batch) grid axis
            # -> fetched once per column tile, resident across batch blocks.
            pl.BlockSpec((1, TN), lambda c, b: (0, c)),
        ],
        out_specs=pl.BlockSpec((TB, TN), lambda c, b: (b, c)),
        compiler_params=pltpu.CompilerParams(
            dimension_semantics=("parallel", "parallel"),
            vmem_limit_bytes=vmem_limit,
        ),
        cost_estimate=pl.CostEstimate(
            flops=B * N,
            transcendentals=0,
            bytes_accessed=(2 * B * N) * itemsize
            + N * pos_embedding.dtype.itemsize,
        ),
        # Write result into x's buffer when requested (donate x at jit boundary).
        input_output_aliases={0: 0} if in_place else {},
    )(x2, pos2)

    return out2.reshape(B, S, D)


if __name__ == "__main__":
    key = jax.random.PRNGKey(0)
    k1, k2, k3, k4, k5, k6 = jax.random.split(key, 6)

    # Small demo shapes consistent with the module.
    B, S, D = 2, 8, 32
    x = jax.random.normal(k1, (B, S, D), dtype=jnp.float32)
    # nn.Parameter(torch.zeros(1, S, D)) is zero-init in the module; use small
    # deterministic non-zero values so the add is actually exercised.
    pos = 0.01 * jax.random.normal(k2, (1, S, D), dtype=jnp.float32)

    out = jax.block_until_ready(learned_positional_embedding_1d(x, pos))
    assert out.shape == (B, S, D)
    assert out.dtype == x.dtype
    assert jnp.allclose(out, x + pos, atol=1e-6, rtol=1e-6)

    # ViT-B/16 @ 224-style shapes: exercises the real (8,128)-tiled,
    # multi-column-block, lane-dense path (N = 197*768, column axis leading).
    B2, S2, D2 = 8, 197, 768
    x_big = jax.random.normal(k3, (B2, S2, D2), dtype=jnp.float32)
    pos_big = 0.01 * jax.random.normal(k4, (1, S2, D2), dtype=jnp.float32)
    out_big = jax.block_until_ready(learned_positional_embedding_1d(x_big, pos_big))
    assert jnp.allclose(out_big, x_big + pos_big, atol=1e-6, rtol=1e-6)

    # bf16 activations + f32 learned parameter: exercises the dtype-aware
    # sublane tile (TB=16) and the in-kernel cast path.
    B3, S3, D3 = 32, 50, 256
    x_bf16 = jax.random.normal(k5, (B3, S3, D3), dtype=jnp.float32).astype(jnp.bfloat16)
    pos_f32 = 0.01 * jax.random.normal(k6, (1, S3, D3), dtype=jnp.float32)
    out_bf16 = jax.block_until_ready(
        learned_positional_embedding_1d(x_bf16, pos_f32)
    )
    assert out_bf16.dtype == jnp.bfloat16
    ref_bf16 = (x_bf16 + pos_f32.astype(jnp.bfloat16)).astype(jnp.bfloat16)
    assert jnp.allclose(
        out_bf16.astype(jnp.float32), ref_bf16.astype(jnp.float32), atol=1e-2, rtol=1e-2
    )

    print("KERNEL_OK")
</pallas_src>

<mosaic_0001>
module attributes {stable_mosaic.version = 11 : i64} {
  func.func @_pos_emb_add_kernel(%arg0: i32, %arg1: i32, %arg2: memref<2x256xf32, #tpu.memory_space<vmem>>, %arg3: memref<1x256xf32, #tpu.memory_space<vmem>>, %arg4: memref<2x256xf32, #tpu.memory_space<vmem>>) attributes {dimension_semantics = [#tpu.dimension_semantics<parallel>, #tpu.dimension_semantics<parallel>], iteration_bounds = array<i64: 1, 1>, scalar_prefetch = 0 : i64, scratch_operands = 0 : i64, tpu.core_type = #tpu.core_type<tc>, window_params = [{transform_indices = @transform_0, window_bounds = array<i64: 2, 256>}, {transform_indices = @transform_1, window_bounds = array<i64: 1, 256>}, {transform_indices = @transform_2, window_bounds = array<i64: 2, 256>}]} {
    %c0 = arith.constant 0 : index
    %c0_0 = arith.constant 0 : index
    %0 = vector.load %arg2[%c0, %c0_0] : memref<2x256xf32, #tpu.memory_space<vmem>>, vector<2x256xf32>
    %c0_1 = arith.constant 0 : index
    %c0_2 = arith.constant 0 : index
    %1 = vector.load %arg3[%c0_1, %c0_2] : memref<1x256xf32, #tpu.memory_space<vmem>>, vector<1x256xf32>
    %2 = vector.broadcast %1 : vector<1x256xf32> to vector<2x256xf32>
    %3 = arith.addf %0, %2 : vector<2x256xf32>
    %c0_3 = arith.constant 0 : index
    %c0_4 = arith.constant 0 : index
    %4 = vector.load %arg4[%c0_3, %c0_4] : memref<2x256xf32, #tpu.memory_space<vmem>>, vector<2x256xf32>
    tpu.vector_store %arg4[%c0_3, %c0_4], %3 {strides = array<i32>} : memref<2x256xf32, #tpu.memory_space<vmem>>, vector<2x256xf32>,
    return
  }
  func.func @transform_0(%arg0: i32, %arg1: i32) -> (i32, i32) {
    %c0_i32 = arith.constant 0 : i32
    return %arg1, %arg0 : i32, i32
  }
  func.func @transform_1(%arg0: i32, %arg1: i32) -> (i32, i32) {
    %c0_i32 = arith.constant 0 : i32
    %c0_i32_0 = arith.constant 0 : i32
    return %c0_i32, %arg0 : i32, i32
  }
  func.func @transform_2(%arg0: i32, %arg1: i32) -> (i32, i32) {
    %c0_i32 = arith.constant 0 : i32
    return %arg1, %arg0 : i32, i32
  }
}

</mosaic_0001>

<llo_original>
// kernel: learned_positional_embedding_1d.1
$region0: #{learned_positional_embedding_1d.1}
  #allocation0 [shape = 'u32[]', space=smem, size = 0x4, offset = 0x4, fixed_abs, tag = 'smem constant byte address 0x4 - core index']
  #allocation1 [shape = 'u32[144,128]{1,0:T(1,128)}', space=vmem, size = 0x12000, scoped, tag = 'internal scratch']
  %s0 = inlined_call_operand.vmem [shape: f32[2,256], index: 0, kind: input, shape index: {}]
  %s1 = inlined_call_operand.vmem [shape: f32[1,256], index: 1, kind: input, shape index: {}]
  %s2 = inlined_call_operand.vmem [shape: f32[2,256], index: 2, kind: output, shape index: {}]
  %s3 = sld [smem:[#allocation0]]
  $region18: #{learned_positional_embedding_1d.1} parent=0
    _
  %s5 = ssub.s32 1, %s3
  %s6 = scalar_select 0, %s5, %s3
  // Predicated region
  $region2: #{learned_positional_embedding_1d.1} parent=0 // pred_check
    _
  $region3: #{learned_positional_embedding_1d.1} parent=0 // pred_check_branch
    %8 = sbr.rel (0) target = $region5
  $region4: #{learned_positional_embedding_1d.1} parent=0 // pred_region
    _
  $region5: #{learned_positional_embedding_1d.1} parent=0 // pred_fallthru
    _
  // Predicated region
  $region6: #{learned_positional_embedding_1d.1} parent=0 // pred_check
    _
  $region7: #{learned_positional_embedding_1d.1} parent=0 // pred_check_branch
    %10 = sbr.rel (0) target = $region9
  $region8: #{learned_positional_embedding_1d.1} parent=0 // pred_region
    _
  $region9: #{learned_positional_embedding_1d.1} parent=0 // pred_fallthru
    _
  %v11 = vld [vmem:[%s0] sm:$0xf]
  %v12 = vld [vmem:[%s1] sm:$0x3]
  %v14 = vlaneseq
  %v15 = vshrl.u32 %v14, 7
  %v16 = vsub.s32 0, %v15
  %v17 = vrot.slane %v12, %v16
  %v18 = vlaneseq
  %v19 = vshrl.u32 %v18, 7
  %v20 = vsub.s32 1, %v19
  %v21 = vrot.slane %v12, %v20
  %v22 = vcombine.low %v17, %v21
  %v24 = vunpack.c.l.s4 1983009808
  %v25 = vunpack.c.0.s8 %v24
  %v26 = vlaneseq
  %v27 = vshrl.u32 %v26, 7
  %v28 = vsub.s32 %v25, %v27
  %v29 = vrot.slane %v22, %v28
  %v31 = vadd.f32 %v11, %v29
  %32 = vst [vmem:[%s2] sm:$0xf] %v31
  // Predicated region
  $region10: #{learned_positional_embedding_1d.1} parent=0 // pred_check
    _
  $region11: #{learned_positional_embedding_1d.1} parent=0 // pred_check_branch
    %34 = sbr.rel (0) target = $region13
  $region12: #{learned_positional_embedding_1d.1} parent=0 // pred_region
    _
  $region13: #{learned_positional_embedding_1d.1} parent=0 // pred_fallthru
    _
  // Predicated region
  $region14: #{learned_positional_embedding_1d.1} parent=0 // pred_check
    _
  $region15: #{learned_positional_embedding_1d.1} parent=0 // pred_check_branch
    %36 = sbr.rel (0) target = $region17
  $region16: #{learned_positional_embedding_1d.1} parent=0 // pred_region
    _
  $region17: #{learned_positional_embedding_1d.1} parent=0 // pred_fallthru
    _

</llo_original>
